<compile_context>
chip_gen: v7x
topology: tpu7x:2x2x1
jax: 0.10.0
libtpu: 0.0.40
codegen_flags: <defaults>
</compile_context>

<pallas_src>
import functools

import jax
import jax.numpy as jnp
from jax.experimental import pallas as pl
from jax.experimental.pallas import tpu as pltpu

IN_SIZE = 32     # inSize = len(X[0]) -- synthetic choice
HIDDEN = 100
OUT = 2

LANE = 128
OUT_PAD = 16     # class rows padded so the bf16 fc2 weight has a >=16 sublane dim


def _round_up(n, m):
    return ((n + m - 1) // m) * m


def _net_kernel(x_ref, w1t_ref, b1_ref, w2t_ref, b2_ref, o_ref):
    # x:   [tb, D]          f32   (natural layout; cast to bf16 in-kernel)
    # w1t: [H_PAD, D]       bf16  (VMEM-resident across grid steps)
    # b1:  [H_PAD, 1]       f32
    # w2t: [OUT_PAD, H_PAD] bf16
    # b2:  [OUT_PAD, 1]     f32
    # o:   [OUT, tb]        f32   (classes on sublanes, batch on lanes -> lane-dense)
    x_bf16 = x_ref[...].astype(jnp.bfloat16)

    # fc1: contract D on both operands' last dim -> [H_PAD, tb] (batch on lanes).
    # The x transpose lives inside the matmul (MXU/XLU slack) instead of HBM traffic.
    h = jax.lax.dot_general(
        w1t_ref[...], x_bf16,
        dimension_numbers=(((1,), (1,)), ((), ())),
        preferred_element_type=jnp.float32)
    h = jnp.maximum(h + b1_ref[...], 0.0)                     # bias + ReLU, f32

    # dropout (eval mode) == identity
    # TODO(synk): training-mode dropout mask (pltpu.prng_seed / prng_random_bits) not emitted.

    # fc2: bf16 operands (v5e MXU is bf16-only; halves activation VMEM traffic), f32 acc.
    logits = jnp.dot(w2t_ref[...], h.astype(jnp.bfloat16),
                     preferred_element_type=jnp.float32) + b2_ref[...]

    # 2-class log_softmax: pure elementwise math on the two class rows,
    # no cross-lane reductions (padded class rows 2..OUT_PAD are never read).
    l0 = logits[0:1, :]                                       # [1, tb]
    l1 = logits[1:2, :]                                       # [1, tb]
    m = jnp.maximum(l0, l1)
    lse = m + jnp.log(jnp.exp(l0 - m) + jnp.exp(l1 - m))      # [1, tb]
    o_ref[...] = (logits[0:OUT, :] - lse).astype(o_ref.dtype)  # [2, tb], lane-dense


def prepare_params(w1, b1, w2, b2):
    """One-time layout prep: pad/transpose/cast the (tiny) weights for the kernel.

    w1: [D, H], b1: [1, H] or [H], w2: [H, OUT], b2: [1, OUT] or [OUT].
    """
    D, H = w1.shape
    assert w2.shape == (H, OUT)
    h_pad = _round_up(H, LANE)
    w1t = jnp.zeros((h_pad, D), jnp.bfloat16).at[:H, :].set(
        jnp.asarray(w1, jnp.float32).T.astype(jnp.bfloat16))
    b1c = jnp.zeros((h_pad, 1), jnp.float32).at[:H, 0].set(
        jnp.asarray(b1, jnp.float32).reshape(-1))
    w2t = jnp.zeros((OUT_PAD, h_pad), jnp.bfloat16).at[:OUT, :H].set(
        jnp.asarray(w2, jnp.float32).T.astype(jnp.bfloat16))
    b2c = jnp.zeros((OUT_PAD, 1), jnp.float32).at[:OUT, 0].set(
        jnp.asarray(b2, jnp.float32).reshape(-1))
    return w1t, b1c, w2t, b2c


def _choose_tile(B, tb_max):
    tb = min(_round_up(tb_max, LANE), _round_up(max(B, 1), LANE))
    # v7x megacore: keep >=2 grid steps when the batch is big enough to split,
    # so dimension_semantics=("parallel",) can use both TensorCores.
    if B > 2 * LANE and pl.cdiv(B, tb) < 2:
        tb = _round_up(pl.cdiv(B, 2), LANE)
    return tb


@functools.partial(jax.jit, static_argnames=("tb", "vmem_limit_bytes"))
def net_forward(x, w1t, b1c, w2t, b2c, *, tb=8192, vmem_limit_bytes=None):
    """x: [B, D] f32; weights from prepare_params(). Returns [B, OUT] f32 log-probs."""
    B, D = x.shape
    h_pad = w1t.shape[0]
    x = jnp.asarray(x, jnp.float32)

    tb_eff = _choose_tile(B, tb)
    B_pad = _round_up(B, tb_eff)
    if B_pad != B:   # pad only the ragged case; aligned batches are fed zero-copy
        x = jnp.pad(x, ((0, B_pad - B), (0, 0)))

    grid = (B_pad // tb_eff,)

    out_t = pl.pallas_call(
        _net_kernel,
        out_shape=jax.ShapeDtypeStruct((OUT, B_pad), jnp.float32),
        grid_spec=pltpu.PrefetchScalarGridSpec(
            num_scalar_prefetch=0,
            grid=grid,
            in_specs=[
                pl.BlockSpec((tb_eff, D), lambda i: (i, 0)),        # x tile (pipelined)
                pl.BlockSpec((h_pad, D), lambda i: (0, 0)),         # w1^T (resident)
                pl.BlockSpec((h_pad, 1), lambda i: (0, 0)),         # b1 (resident)
                pl.BlockSpec((OUT_PAD, h_pad), lambda i: (0, 0)),   # w2^T (resident)
                pl.BlockSpec((OUT_PAD, 1), lambda i: (0, 0)),       # b2 (resident)
            ],
            out_specs=pl.BlockSpec((OUT, tb_eff), lambda i: (0, i)),  # lane-dense out
        ),
        compiler_params=pltpu.CompilerParams(
            dimension_semantics=("parallel",),   # megacore sharding on v7x
            vmem_limit_bytes=vmem_limit_bytes,   # only needed for tb >> 8192
        ),
    )(x, w1t, b1c, w2t, b2c)

    # Undo the transposed / padded output layout (tiny [2, B] transpose).
    return out_t[:, :B].T


def init_params(key):
    """Deterministic init mimicking nn.Linear default (uniform +/- 1/sqrt(fan_in))."""
    k1, k2, k3, k4 = jax.random.split(key, 4)
    bnd1 = 1.0 / jnp.sqrt(IN_SIZE)
    bnd2 = 1.0 / jnp.sqrt(HIDDEN)
    w1 = jax.random.uniform(k1, (IN_SIZE, HIDDEN), jnp.float32, -bnd1, bnd1)
    b1 = jax.random.uniform(k2, (1, HIDDEN), jnp.float32, -bnd1, bnd1)
    w2 = jax.random.uniform(k3, (HIDDEN, OUT), jnp.float32, -bnd2, bnd2)
    b2 = jax.random.uniform(k4, (1, OUT), jnp.float32, -bnd2, bnd2)
    return w1, b1, w2, b2


def _ref_forward(x, w1, b1, w2, b2):
    """Pure-JAX reference with the same bf16 matmul operands as the kernel."""
    h = jnp.dot(x.astype(jnp.bfloat16), w1.astype(jnp.bfloat16),
                preferred_element_type=jnp.float32) + jnp.asarray(b1, jnp.float32).reshape(1, -1)
    h = jnp.maximum(h, 0.0)
    logits = jnp.dot(h.astype(jnp.bfloat16), w2.astype(jnp.bfloat16),
                     preferred_element_type=jnp.float32) + jnp.asarray(b2, jnp.float32).reshape(1, -1)
    return jax.nn.log_softmax(logits, axis=1)


if __name__ == "__main__":
    key = jax.random.PRNGKey(0)
    kx, kx2, kp = jax.random.split(key, 3)

    w1, b1, w2, b2 = init_params(kp)
    params = prepare_params(w1, b1, w2, b2)   # one-time weight layout prep

    # Small demo batch (single grid step, ragged pad 8 -> 128).
    B = 8
    x = jax.random.normal(kx, (B, IN_SIZE), jnp.float32)
    out = jax.block_until_ready(net_forward(x, *params))
    ref = _ref_forward(x, w1, b1, w2, b2)
    assert out.shape == (B, OUT)
    assert bool(jnp.allclose(out, ref, atol=1e-4, rtol=1e-3))

    # Larger batch: tile heuristic picks tb=256 -> grid=(2,) (exercises the multi-step
    # pipeline, the megacore split path, and the ragged-batch pad 300 -> 512).
    B2 = 300
    x2 = jax.random.normal(kx2, (B2, IN_SIZE), jnp.float32)
    out2 = jax.block_until_ready(net_forward(x2, *params))
    ref2 = _ref_forward(x2, w1, b1, w2, b2)
    assert out2.shape == (B2, OUT)
    assert bool(jnp.allclose(out2, ref2, atol=1e-4, rtol=1e-3))

    print("KERNEL_OK")
</pallas_src>

<mosaic_0001>
module attributes {stable_mosaic.version = 11 : i64} {
  func.func @_net_kernel(%arg0: i32, %arg1: memref<128x32xf32, #tpu.memory_space<vmem>>, %arg2: memref<128x32xbf16, #tpu.memory_space<vmem>>, %arg3: memref<128x1xf32, #tpu.memory_space<vmem>>, %arg4: memref<16x128xbf16, #tpu.memory_space<vmem>>, %arg5: memref<16x1xf32, #tpu.memory_space<vmem>>, %arg6: memref<2x128xf32, #tpu.memory_space<vmem>>) attributes {dimension_semantics = [#tpu.dimension_semantics<parallel>], iteration_bounds = array<i64: 1>, scalar_prefetch = 0 : i64, scratch_operands = 0 : i64, tpu.core_type = #tpu.core_type<tc>, window_params = [{transform_indices = @transform_0, window_bounds = array<i64: 128, 32>}, {pipeline_mode = #tpu.pipeline_mode<synchronous>, transform_indices = @transform_1, window_bounds = array<i64: 128, 32>}, {pipeline_mode = #tpu.pipeline_mode<synchronous>, transform_indices = @transform_2, window_bounds = array<i64: 128, 1>}, {pipeline_mode = #tpu.pipeline_mode<synchronous>, transform_indices = @transform_3, window_bounds = array<i64: 16, 128>}, {pipeline_mode = #tpu.pipeline_mode<synchronous>, transform_indices = @transform_4, window_bounds = array<i64: 16, 1>}, {transform_indices = @transform_5, window_bounds = array<i64: 2, 128>}]} {
    %c0 = arith.constant 0 : index
    %c0_0 = arith.constant 0 : index
    %0 = vector.load %arg1[%c0, %c0_0] : memref<128x32xf32, #tpu.memory_space<vmem>>, vector<128x32xf32>
    %1 = arith.truncf %0 : vector<128x32xf32> to vector<128x32xbf16>
    %c0_1 = arith.constant 0 : index
    %c0_2 = arith.constant 0 : index
    %2 = vector.load %arg2[%c0_1, %c0_2] : memref<128x32xbf16, #tpu.memory_space<vmem>>, vector<128x32xbf16>
    %cst = arith.constant dense<0.000000e+00> : vector<128x128xf32>
    %3 = tpu.matmul %2, %1, %cst {dimension_numbers = #tpu.dot_dimension_numbers<[1], [1], [0], [0], [0, 0, 1, 0], [], []>} : vector<128x32xbf16>, vector<128x32xbf16>, vector<128x128xf32> -> vector<128x128xf32>
    %c0_3 = arith.constant 0 : index
    %c0_4 = arith.constant 0 : index
    %4 = vector.load %arg3[%c0_3, %c0_4] : memref<128x1xf32, #tpu.memory_space<vmem>>, vector<128x1xf32>
    %5 = vector.broadcast %4 : vector<128x1xf32> to vector<128x128xf32>
    %6 = arith.addf %3, %5 : vector<128x128xf32>
    %cst_5 = arith.constant 0.000000e+00 : f32
    %7 = vector.broadcast %cst_5 : f32 to vector<128x128xf32>
    %8 = arith.maximumf %6, %7 : vector<128x128xf32>
    %c0_6 = arith.constant 0 : index
    %c0_7 = arith.constant 0 : index
    %9 = vector.load %arg4[%c0_6, %c0_7] : memref<16x128xbf16, #tpu.memory_space<vmem>>, vector<16x128xbf16>
    %10 = arith.truncf %8 : vector<128x128xf32> to vector<128x128xbf16>
    %cst_8 = arith.constant dense<0.000000e+00> : vector<16x128xf32>
    %11 = tpu.matmul %9, %10, %cst_8 {dimension_numbers = #tpu.dot_dimension_numbers<[1], [0], [0], [1], [0, 0, 1, 1], [], []>} : vector<16x128xbf16>, vector<128x128xbf16>, vector<16x128xf32> -> vector<16x128xf32>
    %c0_9 = arith.constant 0 : index
    %c0_10 = arith.constant 0 : index
    %12 = vector.load %arg5[%c0_9, %c0_10] : memref<16x1xf32, #tpu.memory_space<vmem>>, vector<16x1xf32>
    %13 = vector.broadcast %12 : vector<16x1xf32> to vector<16x128xf32>
    %14 = arith.addf %11, %13 : vector<16x128xf32>
    %15 = vector.extract_strided_slice %14 {offsets = [0, 0], sizes = [1, 128], strides = [1, 1]} : vector<16x128xf32> to vector<1x128xf32>
    %16 = vector.extract_strided_slice %14 {offsets = [1, 0], sizes = [1, 128], strides = [1, 1]} : vector<16x128xf32> to vector<1x128xf32>
    %17 = arith.maximumf %15, %16 : vector<1x128xf32>
    %18 = arith.subf %15, %17 : vector<1x128xf32>
    %19 = math.exp %18 : vector<1x128xf32>
    %20 = arith.subf %16, %17 : vector<1x128xf32>
    %21 = math.exp %20 : vector<1x128xf32>
    %22 = arith.addf %19, %21 : vector<1x128xf32>
    %23 = math.log %22 : vector<1x128xf32>
    %24 = arith.addf %17, %23 : vector<1x128xf32>
    %25 = vector.extract_strided_slice %14 {offsets = [0, 0], sizes = [2, 128], strides = [1, 1]} : vector<16x128xf32> to vector<2x128xf32>
    %26 = vector.broadcast %24 : vector<1x128xf32> to vector<2x128xf32>
    %27 = arith.subf %25, %26 : vector<2x128xf32>
    %c0_11 = arith.constant 0 : index
    %c0_12 = arith.constant 0 : index
    %28 = vector.load %arg6[%c0_11, %c0_12] : memref<2x128xf32, #tpu.memory_space<vmem>>, vector<2x128xf32>
    tpu.vector_store %arg6[%c0_11, %c0_12], %27 {strides = array<i32>} : memref<2x128xf32, #tpu.memory_space<vmem>>, vector<2x128xf32>,
    return
  }
  func.func @transform_0(%arg0: i32) -> (i32, i32) {
    %c0_i32 = arith.constant 0 : i32
    %c0_i32_0 = arith.constant 0 : i32
    return %arg0, %c0_i32 : i32, i32
  }
  func.func @transform_1(%arg0: i32) -> (i32, i32) {
    %c0_i32 = arith.constant 0 : i32
    %c0_i32_0 = arith.constant 0 : i32
    %c0_i32_1 = arith.constant 0 : i32
    return %c0_i32, %c0_i32_0 : i32, i32
  }
  func.func @transform_2(%arg0: i32) -> (i32, i32) {
    %c0_i32 = arith.constant 0 : i32
    %c0_i32_0 = arith.constant 0 : i32
    %c0_i32_1 = arith.constant 0 : i32
    return %c0_i32, %c0_i32_0 : i32, i32
  }
  func.func @transform_3(%arg0: i32) -> (i32, i32) {
    %c0_i32 = arith.constant 0 : i32
    %c0_i32_0 = arith.constant 0 : i32
    %c0_i32_1 = arith.constant 0 : i32
    return %c0_i32, %c0_i32_0 : i32, i32
  }
  func.func @transform_4(%arg0: i32) -> (i32, i32) {
    %c0_i32 = arith.constant 0 : i32
    %c0_i32_0 = arith.constant 0 : i32
    %c0_i32_1 = arith.constant 0 : i32
    return %c0_i32, %c0_i32_0 : i32, i32
  }
  func.func @transform_5(%arg0: i32) -> (i32, i32) {
    %c0_i32 = arith.constant 0 : i32
    %c0_i32_0 = arith.constant 0 : i32
    return %c0_i32, %arg0 : i32, i32
  }
}

</mosaic_0001>

<llo_original>
// kernel: net_forward.1
$region0: #{net_forward.1}
  #allocation0 [shape = 'u32[]', space=smem, size = 0x4, offset = 0x4, fixed_abs, tag = 'smem constant byte address 0x4 - core index']
  #allocation1 [shape = 'u32[144,128]{1,0:T(1,128)}', space=vmem, size = 0x12000, scoped, tag = 'internal scratch']
  %s0 = inlined_call_operand.vmem [shape: f32[128,32], index: 0, kind: input, shape index: {}]
  %s1 = inlined_call_operand.vmem [shape: bf16[128,32], index: 1, kind: input, shape index: {}]
  %s2 = inlined_call_operand.vmem [shape: f32[128,1], index: 2, kind: input, shape index: {}]
  %s3 = inlined_call_operand.vmem [shape: bf16[16,128], index: 3, kind: input, shape index: {}]
  %s4 = inlined_call_operand.vmem [shape: f32[16,1], index: 4, kind: input, shape index: {}]
  %s5 = inlined_call_operand.vmem [shape: f32[2,128], index: 5, kind: output, shape index: {}]
  %s6 = sld [smem:[#allocation0]]
  $region30: #{net_forward.1} parent=0
    _
  %s8 = ssub.s32 1, %s6
  %s9 = scalar_select 0, %s8, %s6
  // Predicated region
  $region2: #{net_forward.1} parent=0 // pred_check
    _
  $region3: #{net_forward.1} parent=0 // pred_check_branch
    %11 = sbr.rel (0) target = $region5
  $region4: #{net_forward.1} parent=0 // pred_region
    _
  $region5: #{net_forward.1} parent=0 // pred_fallthru
    _
  // Predicated region
  $region6: #{net_forward.1} parent=0 // pred_check
    _
  $region7: #{net_forward.1} parent=0 // pred_check_branch
    %13 = sbr.rel (0) target = $region9
  $region8: #{net_forward.1} parent=0 // pred_region
    _
  $region9: #{net_forward.1} parent=0 // pred_fallthru
    _
  // Predicated region
  $region10: #{net_forward.1} parent=0 // pred_check
    _
  $region11: #{net_forward.1} parent=0 // pred_check_branch
    %15 = sbr.rel (0) target = $region13
  $region12: #{net_forward.1} parent=0 // pred_region
    _
  $region13: #{net_forward.1} parent=0 // pred_fallthru
    _
  // Predicated region
  $region14: #{net_forward.1} parent=0 // pred_check
    _
  $region15: #{net_forward.1} parent=0 // pred_check_branch
    %17 = sbr.rel (0) target = $region17
  $region16: #{net_forward.1} parent=0 // pred_region
    _
  $region17: #{net_forward.1} parent=0 // pred_fallthru
    _
  // Predicated region
  $region18: #{net_forward.1} parent=0 // pred_check
    _
  $region19: #{net_forward.1} parent=0 // pred_check_branch
    %19 = sbr.rel (0) target = $region21
  $region20: #{net_forward.1} parent=0 // pred_region
    _
  $region21: #{net_forward.1} parent=0 // pred_fallthru
    _
  %v21 = vld [vmem:[%s0] sm:$0xff]
  %v22 = vld [vmem:[%s0 + $0x8] sm:$0xff]
  %v23 = vld [vmem:[%s0 + $0x10] sm:$0xff]
  %v24 = vld [vmem:[%s0 + $0x18] sm:$0xff]
  %v25 = vld [vmem:[%s0 + $0x20] sm:$0xff]
  %v26 = vld [vmem:[%s0 + $0x28] sm:$0xff]
  %v27 = vld [vmem:[%s0 + $0x30] sm:$0xff]
  %v28 = vld [vmem:[%s0 + $0x38] sm:$0xff]
  %v29 = vld [vmem:[%s0 + $0x40] sm:$0xff]
  %v30 = vld [vmem:[%s0 + $0x48] sm:$0xff]
  %v31 = vld [vmem:[%s0 + $0x50] sm:$0xff]
  %v32 = vld [vmem:[%s0 + $0x58] sm:$0xff]
  %v33 = vld [vmem:[%s0 + $0x60] sm:$0xff]
  %v34 = vld [vmem:[%s0 + $0x68] sm:$0xff]
  %v35 = vld [vmem:[%s0 + $0x70] sm:$0xff]
  %v36 = vld [vmem:[%s0 + $0x78] sm:$0xff]
  %v37 = vpack.c.bf16 %v22, %v21
  %v38 = vpack.c.bf16 %v24, %v23
  %v39 = vpack.c.bf16 %v26, %v25
  %v40 = vpack.c.bf16 %v28, %v27
  %v41 = vpack.c.bf16 %v30, %v29
  %v42 = vpack.c.bf16 %v32, %v31
  %v43 = vpack.c.bf16 %v34, %v33
  %v44 = vpack.c.bf16 %v36, %v35
  %v45 = vld [vmem:[%s1] sm:$0xf]
  %v46 = vld [vmem:[%s1 + $0x4] sm:$0xf]
  %v47 = vld [vmem:[%s1 + $0x8] sm:$0xf]
  %v48 = vld [vmem:[%s1 + $0xc] sm:$0xf]
  %v49 = vld [vmem:[%s1 + $0x10] sm:$0xf]
  %v50 = vld [vmem:[%s1 + $0x14] sm:$0xf]
  %v51 = vld [vmem:[%s1 + $0x18] sm:$0xf]
  %v52 = vld [vmem:[%s1 + $0x1c] sm:$0xf]
  %v53 = vld [vmem:[%s1 + $0x20] sm:$0xf]
  %v54 = vld [vmem:[%s1 + $0x24] sm:$0xf]
  %v55 = vld [vmem:[%s1 + $0x28] sm:$0xf]
  %v56 = vld [vmem:[%s1 + $0x2c] sm:$0xf]
  %v57 = vld [vmem:[%s1 + $0x30] sm:$0xf]
  %v58 = vld [vmem:[%s1 + $0x34] sm:$0xf]
  %v59 = vld [vmem:[%s1 + $0x38] sm:$0xf]
  %v60 = vld [vmem:[%s1 + $0x3c] sm:$0xf]
  %v61 = vld [vmem:[%s2] sm:$0xff]
  %v62 = vld [vmem:[%s2 + $0x8] sm:$0xff]
  %v63 = vld [vmem:[%s2 + $0x10] sm:$0xff]
  %v64 = vld [vmem:[%s2 + $0x18] sm:$0xff]
  %v65 = vld [vmem:[%s2 + $0x20] sm:$0xff]
  %v66 = vld [vmem:[%s2 + $0x28] sm:$0xff]
  %v67 = vld [vmem:[%s2 + $0x30] sm:$0xff]
  %v68 = vld [vmem:[%s2 + $0x38] sm:$0xff]
  %v69 = vld [vmem:[%s2 + $0x40] sm:$0xff]
  %v70 = vld [vmem:[%s2 + $0x48] sm:$0xff]
  %v71 = vld [vmem:[%s2 + $0x50] sm:$0xff]
  %v72 = vld [vmem:[%s2 + $0x58] sm:$0xff]
  %v73 = vld [vmem:[%s2 + $0x60] sm:$0xff]
  %v74 = vld [vmem:[%s2 + $0x68] sm:$0xff]
  %v75 = vld [vmem:[%s2 + $0x70] sm:$0xff]
  %v76 = vld [vmem:[%s2 + $0x78] sm:$0xff]
  %78 = vset.pattern.permute.xlu0 0
  %79 = vperm.xlu0 %78, %v61
  %v80 = vpop.permute.xlu0 %79
  %83 = vset.pattern.permute.xlu0 0
  %84 = vperm.xlu0 %83, %v62
  %v85 = vpop.permute.xlu0 %84
  %88 = vset.pattern.permute.xlu0 0
  %89 = vperm.xlu0 %88, %v63
  %v90 = vpop.permute.xlu0 %89
  %93 = vset.pattern.permute.xlu0 0
  %94 = vperm.xlu0 %93, %v64
  %v95 = vpop.permute.xlu0 %94
  %98 = vset.pattern.permute.xlu0 0
  %99 = vperm.xlu0 %98, %v65
  %v100 = vpop.permute.xlu0 %99
  %103 = vset.pattern.permute.xlu0 0
  %104 = vperm.xlu0 %103, %v66
  %v105 = vpop.permute.xlu0 %104
  %108 = vset.pattern.permute.xlu0 0
  %109 = vperm.xlu0 %108, %v67
  %v110 = vpop.permute.xlu0 %109
  %113 = vset.pattern.permute.xlu0 0
  %114 = vperm.xlu0 %113, %v68
  %v115 = vpop.permute.xlu0 %114
  %118 = vset.pattern.permute.xlu0 0
  %119 = vperm.xlu0 %118, %v69
  %v120 = vpop.permute.xlu0 %119
  %123 = vset.pattern.permute.xlu0 0
  %124 = vperm.xlu0 %123, %v70
  %v125 = vpop.permute.xlu0 %124
  %128 = vset.pattern.permute.xlu0 0
  %129 = vperm.xlu0 %128, %v71
  %v130 = vpop.permute.xlu0 %129
  %133 = vset.pattern.permute.xlu0 0
  %134 = vperm.xlu0 %133, %v72
  %v135 = vpop.permute.xlu0 %134
  %138 = vset.pattern.permute.xlu0 0
  %139 = vperm.xlu0 %138, %v73
  %v140 = vpop.permute.xlu0 %139
  %143 = vset.pattern.permute.xlu0 0
  %144 = vperm.xlu0 %143, %v74
  %v145 = vpop.permute.xlu0 %144
  %148 = vset.pattern.permute.xlu0 0
  %149 = vperm.xlu0 %148, %v75
  %v150 = vpop.permute.xlu0 %149
  %153 = vset.pattern.permute.xlu0 0
  %154 = vperm.xlu0 %153, %v76
  %v155 = vpop.permute.xlu0 %154
  %v173 = vunpack.c.l.b16 %v45
  %v174 = vunpack.c.l.b16 %v46
  %v175 = vunpack.c.l.b16 %v47
  %v176 = vunpack.c.l.b16 %v48
  %v177 = vunpack.c.l.b16 %v49
  %v178 = vunpack.c.l.b16 %v50
  %v179 = vunpack.c.l.b16 %v51
  %v180 = vunpack.c.l.b16 %v52
  %v181 = vunpack.c.l.b16 %v53
  %v182 = vunpack.c.l.b16 %v54
  %v183 = vunpack.c.l.b16 %v55
  %v184 = vunpack.c.l.b16 %v56
  %v185 = vunpack.c.l.b16 %v57
  %v186 = vunpack.c.l.b16 %v58
  %v187 = vunpack.c.l.b16 %v59
  %v188 = vunpack.c.l.b16 %v60
  %v189 = vpack.c.b16 %v174, %v173
  %v190 = vpack.c.b16 %v176, %v175
  %v191 = vpack.c.b16 %v178, %v177
  %v192 = vpack.c.b16 %v180, %v179
  %v193 = vpack.c.b16 %v182, %v181
  %v194 = vpack.c.b16 %v184, %v183
  %v195 = vpack.c.b16 %v186, %v185
  %v196 = vpack.c.b16 %v188, %v187
  %vm197 = vcmask 261120
  %v199 = vsel %vm197, %v189, 0
  %v202 = vsel %vm197, %v190, 0
  %v205 = vsel %vm197, %v191, 0
  %v208 = vsel %vm197, %v192, 0
  %v211 = vsel %vm197, %v193, 0
  %v214 = vsel %vm197, %v194, 0
  %v217 = vsel %vm197, %v195, 0
  %v220 = vsel %vm197, %v196, 0
  %v223 = vsel %vm197, %v37, 0
  %v226 = vsel %vm197, %v38, 0
  %v229 = vsel %vm197, %v39, 0
  %v232 = vsel %vm197, %v40, 0
  %v235 = vsel %vm197, %v41, 0
  %v238 = vsel %vm197, %v42, 0
  %v241 = vsel %vm197, %v43, 0
  %v244 = vsel %vm197, %v44, 0
  %246 = vmatprep.subr.bf16.mxu0 0
  %247 = vmatpush1.bf16.xpose.msra.mxu0 %v223
  %248 = vmatprep.subr.bf16.mxu0 0
  %249 = vmatpush1.bf16.xpose.msra.mxu0 %v226
  %250 = vmatprep.subr.bf16.mxu0 0
  %251 = vmatpush1.bf16.xpose.msra.mxu0 %v229
  %252 = vmatprep.subr.bf16.mxu0 0
  %253 = vmatpush1.bf16.xpose.msra.mxu0 %v232
  %254 = vmatprep.subr.bf16.mxu0 0
  %255 = vmatpush1.bf16.xpose.msra.mxu0 %v235
  %256 = vmatprep.subr.bf16.mxu0 0
  %257 = vmatpush1.bf16.xpose.msra.mxu0 %v238
  %258 = vmatprep.subr.bf16.mxu0 0
  %259 = vmatpush1.bf16.xpose.msra.mxu0 %v241
  %260 = vmatprep.subr.bf16.mxu0 0
  %261 = vmatpush1.bf16.xpose.msra.mxu0 %v244
  %262 = vmatprep.subr.bf16.mxu0 0
  %263 = vmatpush1.bf16.xpose.msra.mxu0 0
  %264 = vmatprep.subr.bf16.mxu0 0
  %265 = vmatpush1.bf16.xpose.msra.mxu0 0
  %266 = vmatprep.subr.bf16.mxu0 0
  %267 = vmatpush1.bf16.xpose.msra.mxu0 0
  %268 = vmatprep.subr.bf16.mxu0 0
  %269 = vmatpush1.bf16.xpose.msra.mxu0 0
  %270 = vmatprep.subr.bf16.mxu0 0
  %271 = vmatpush1.bf16.xpose.msra.mxu0 0
  %272 = vmatprep.subr.bf16.mxu0 0
  %273 = vmatpush1.bf16.xpose.msra.mxu0 0
  %274 = vmatprep.subr.bf16.mxu0 0
  %275 = vmatpush1.bf16.xpose.msra.mxu0 0
  %276 = vmatprep.subr.bf16.mxu0 0
  %277 = vmatpush1.bf16.xpose.msra.mxu0 0
  %278 = vmatprep.mubr.bf16.mxu0 0
  %279 = vmatmul.mubr.bf16.gmra.mrb[0].mxu0 %v199
  %v280 = vpop.f32.mrb[0].mxu0
  %v281 = vadd.f32 %v80, %v280
  %v282 = vpop.f32.mrb[0].mxu0
  %v283 = vpop.f32.mrb[0].mxu0
  %v284 = vadd.f32 %v85, %v283
  %v285 = vpop.f32.mrb[0].mxu0
  %286 = vmatprep.mubr.bf16.mxu0 0
  %287 = vmatmul.mubr.bf16.gmra.mrb[0].mxu0 %v202
  %v288 = vpop.f32.mrb[0].mxu0
  %v289 = vadd.f32 %v90, %v288
  %v290 = vpop.f32.mrb[0].mxu0
  %v291 = vpop.f32.mrb[0].mxu0
  %v292 = vadd.f32 %v95, %v291
  %v293 = vpop.f32.mrb[0].mxu0
  %294 = vmatprep.mubr.bf16.mxu0 0
  %295 = vmatmul.mubr.bf16.gmra.mrb[0].mxu0 %v205
  %v296 = vpop.f32.mrb[0].mxu0
  %v297 = vadd.f32 %v100, %v296
  %v298 = vpop.f32.mrb[0].mxu0
  %v299 = vpop.f32.mrb[0].mxu0
  %v300 = vadd.f32 %v105, %v299
  %v301 = vpop.f32.mrb[0].mxu0
  %302 = vmatprep.mubr.bf16.mxu0 0
  %303 = vmatmul.mubr.bf16.gmra.mrb[0].mxu0 %v208
  %v304 = vpop.f32.mrb[0].mxu0
  %v305 = vadd.f32 %v110, %v304
  %v306 = vpop.f32.mrb[0].mxu0
  %v307 = vpop.f32.mrb[0].mxu0
  %v308 = vadd.f32 %v115, %v307
  %v309 = vpop.f32.mrb[0].mxu0
  %310 = vmatprep.mubr.bf16.mxu0 0
  %311 = vmatmul.mubr.bf16.gmra.mrb[0].mxu0 %v211
  %v312 = vpop.f32.mrb[0].mxu0
  %v313 = vadd.f32 %v120, %v312
  %v314 = vpop.f32.mrb[0].mxu0
  %v315 = vpop.f32.mrb[0].mxu0
  %v316 = vadd.f32 %v125, %v315
  %v317 = vpop.f32.mrb[0].mxu0
  %318 = vmatprep.mubr.bf16.mxu0 0
  %319 = vmatmul.mubr.bf16.gmra.mrb[0].mxu0 %v214
  %v320 = vpop.f32.mrb[0].mxu0
  %v321 = vadd.f32 %v130, %v320
  %v322 = vpop.f32.mrb[0].mxu0
  %v323 = vpop.f32.mrb[0].mxu0
  %v324 = vadd.f32 %v135, %v323
  %v325 = vpop.f32.mrb[0].mxu0
  %326 = vmatprep.mubr.bf16.mxu0 0
  %327 = vmatmul.mubr.bf16.gmra.mrb[0].mxu0 %v217
  %v328 = vpop.f32.mrb[0].mxu0
  %v329 = vadd.f32 %v140, %v328
  %v330 = vpop.f32.mrb[0].mxu0
  %v331 = vpop.f32.mrb[0].mxu0
  %v332 = vadd.f32 %v145, %v331
  %v333 = vpop.f32.mrb[0].mxu0
  %334 = vmatprep.mubr.bf16.mxu0 0
  %335 = vmatmul.mubr.bf16.gmra.mrb[0].mxu0 %v220
  %v336 = vpop.f32.mrb[0].mxu0
  %v337 = vadd.f32 %v150, %v336
  %v338 = vpop.f32.mrb[0].mxu0
  %v339 = vpop.f32.mrb[0].mxu0
  %v340 = vadd.f32 %v155, %v339
  %v341 = vpop.f32.mrb[0].mxu0
  %342 = vdwg.mxu0
  %v343 = vmax.f32 %v281, 0.0
  %v344 = vmax.f32 %v284, 0.0
  %v345 = vmax.f32 %v289, 0.0
  %v346 = vmax.f32 %v292, 0.0
  %v347 = vmax.f32 %v297, 0.0
  %v348 = vmax.f32 %v300, 0.0
  %v349 = vmax.f32 %v305, 0.0
  %v350 = vmax.f32 %v308, 0.0
  %v351 = vmax.f32 %v313, 0.0
  %v352 = vmax.f32 %v316, 0.0
  %v353 = vmax.f32 %v321, 0.0
  %v354 = vmax.f32 %v324, 0.0
  %v355 = vmax.f32 %v329, 0.0
  %v356 = vmax.f32 %v332, 0.0
  %v357 = vmax.f32 %v337, 0.0
  %v358 = vmax.f32 %v340, 0.0
  %v359 = vld [vmem:[%s3] sm:$0xf]
  %v360 = vld [vmem:[%s3 + $0x4] sm:$0xf]
  %v361 = vpack.c.bf16 %v344, %v343
  %v362 = vpack.c.bf16 %v346, %v345
  %v363 = vpack.c.bf16 %v348, %v347
  %v364 = vpack.c.bf16 %v350, %v349
  %v365 = vpack.c.bf16 %v352, %v351
  %v366 = vpack.c.bf16 %v354, %v353
  %v367 = vpack.c.bf16 %v356, %v355
  %v368 = vpack.c.bf16 %v358, %v357
  %v369 = vld [vmem:[%s4] sm:$0xff]
  %v370 = vld [vmem:[%s4 + $0x8] sm:$0xff]
  %372 = vset.pattern.permute.xlu0 0
  %373 = vperm.xlu0 %372, %v369
  %v374 = vpop.permute.xlu0 %373
  %377 = vset.pattern.permute.xlu0 0
  %378 = vperm.xlu0 %377, %v370
  %v379 = vpop.permute.xlu0 %378
  %v382 = vunpack.c.l.b16 %v359
  %v383 = vunpack.c.l.b16 %v360
  %v384 = vpack.c.b16 %v383, %v382
  %386 = vmatprep.subr.bf16.mxu0 0
  %387 = vmatpush1.bf16.msra.mxu0 %v361
  %388 = vmatprep.subr.bf16.mxu0 0
  %389 = vmatpush1.bf16.msra.mxu0 %v362
  %390 = vmatprep.subr.bf16.mxu0 0
  %391 = vmatpush1.bf16.msra.mxu0 %v363
  %392 = vmatprep.subr.bf16.mxu0 0
  %393 = vmatpush1.bf16.msra.mxu0 %v364
  %394 = vmatprep.subr.bf16.mxu0 0
  %395 = vmatpush1.bf16.msra.mxu0 %v365
  %396 = vmatprep.subr.bf16.mxu0 0
  %397 = vmatpush1.bf16.msra.mxu0 %v366
  %398 = vmatprep.subr.bf16.mxu0 0
  %399 = vmatpush1.bf16.msra.mxu0 %v367
  %400 = vmatprep.subr.bf16.mxu0 0
  %401 = vmatpush1.bf16.msra.mxu0 %v368
  %402 = vmatprep.subr.bf16.mxu0 0
  %403 = vmatpush1.bf16.msra.mxu0 0
  %404 = vmatprep.subr.bf16.mxu0 0
  %405 = vmatpush1.bf16.msra.mxu0 0
  %406 = vmatprep.subr.bf16.mxu0 0
  %407 = vmatpush1.bf16.msra.mxu0 0
  %408 = vmatprep.subr.bf16.mxu0 0
  %409 = vmatpush1.bf16.msra.mxu0 0
  %410 = vmatprep.subr.bf16.mxu0 0
  %411 = vmatpush1.bf16.msra.mxu0 0
  %412 = vmatprep.subr.bf16.mxu0 0
  %413 = vmatpush1.bf16.msra.mxu0 0
  %414 = vmatprep.subr.bf16.mxu0 0
  %415 = vmatpush1.bf16.msra.mxu0 0
  %416 = vmatprep.subr.bf16.mxu0 0
  %417 = vmatpush1.bf16.msra.mxu0 0
  %418 = vmatprep.mubr.bf16.mxu0 0
  %419 = vmatmul.mubr.bf16.gmra.mrb[0].mxu0 %v384
  %v420 = vpop.f32.mrb[0].mxu0
  %v421 = vadd.f32 %v374, %v420
  %v422 = vpop.f32.mrb[0].mxu0
  %v423 = vpop.f32.mrb[0].mxu0
  %v424 = vpop.f32.mrb[0].mxu0
  %425 = vdwg.mxu0
  %v427 = vrot.slane %v421, 1
  %v429 = vmax.f32 %v421, %v427
  %v430 = vsub.f32 %v421, %v429
  %v431 = vmul.f32 %v430, 1.442695
  %v432 = vpow.pop %v431
  %v434 = vrot.slane %v429, 7
  %v436 = vsub.f32 %v421, %v434
  %v437 = vmul.f32 %v436, 1.442695
  %v438 = vpow.pop %v437
  %v440 = vrot.slane %v438, 1
  %v442 = vadd.f32 %v432, %v440
  %v443 = vlog2.pop %v442
  %v444 = vmul.f32 %v443, 0.6931472
  %v445 = vadd.f32 %v429, %v444
  %v446 = vlaneseq
  %v447 = vshrl.u32 %v446, 7
  %v448 = vsub.s32 0, %v447
  %v449 = vrot.slane %v445, %v448
  %v450 = vsub.f32 %v421, %v449
  %451 = vst [vmem:[%s5] sm:$0x3] %v450
  // Predicated region
  $region22: #{net_forward.1} parent=0 // pred_check
    _
  $region23: #{net_forward.1} parent=0 // pred_check_branch
    %453 = sbr.rel (0) target = $region25
  $region24: #{net_forward.1} parent=0 // pred_region
    _
  $region25: #{net_forward.1} parent=0 // pred_fallthru
    _
  // Predicated region
  $region26: #{net_forward.1} parent=0 // pred_check
    _
  $region27: #{net_forward.1} parent=0 // pred_check_branch
    %455 = sbr.rel (0) target = $region29
  $region28: #{net_forward.1} parent=0 // pred_region
    _
  $region29: #{net_forward.1} parent=0 // pred_fallthru
    _

</llo_original>
